<compile_context>
chip_gen: v7x
topology: tpu7x:2x2x1
jax: 0.10.0
libtpu: 0.0.40
codegen_flags: <defaults>
</compile_context>

<pallas_src>
import functools

import jax
import jax.numpy as jnp
from jax.experimental import pallas as pl
from jax.experimental.pallas import tpu as pltpu


def _round_up(x, m):
    return ((x + m - 1) // m) * m


def _chip_config():
    """Generation-aware defaults: row tile, VMEM limit, #TensorCores hint."""
    try:
        kind = jax.devices()[0].device_kind.lower()
    except Exception:
        kind = ""
    if "v5 lite" in kind or "v5e" in kind or "v5lite" in kind:
        # v5e knee ~240 FLOP/byte: tile_m=256 already sits at the roofline.
        return {"tile_m": 256, "vmem": 96 * 1024 * 1024, "two_tc": False}
    if "v7" in kind:
        # v7x: 64 MiB VMEM/TC, knee ~310 FLOP/byte, 2 TCs per chip.
        return {"tile_m": 512, "vmem": 56 * 1024 * 1024, "two_tc": True}
    if "v6" in kind or "trillium" in kind:
        # v6e: knee ~650 FLOP/byte, 128 MiB VMEM -> big row tiles.
        return {"tile_m": 768, "vmem": 96 * 1024 * 1024, "two_tc": False}
    # Unknown generation: conservative settings.
    return {"tile_m": 256, "vmem": 64 * 1024 * 1024, "two_tc": False}


def _ff_tile(d_ff_p, tile_ff):
    """Largest multiple of 128 that divides d_ff_p and is <= tile_ff."""
    n = d_ff_p // 128
    cap = max(1, tile_ff // 128)
    best = 1
    for c in range(1, min(n, cap) + 1):
        if n % c == 0:
            best = c
    return best * 128


def _ffn_kernel_acc_in_out(x_ref, w1_ref, b1_ref, w2_ref, b2_ref, o_ref):
    """f32 output path: accumulate fc2 partials directly into resident o_ref."""
    k = pl.program_id(1)
    x = x_ref[...].astype(jnp.bfloat16)            # cast on VPU after DMA
    h = jnp.dot(x, w1_ref[...], preferred_element_type=jnp.float32)
    h = jnp.maximum(h + b1_ref[...], 0.0)          # fc1 bias + ReLU
    # dropout: identity in eval mode.
    part = jnp.dot(h.astype(jnp.bfloat16), w2_ref[...],
                   preferred_element_type=jnp.float32)

    @pl.when(k == 0)
    def _():
        o_ref[...] = part + b2_ref[...]            # fc2 bias added exactly once

    @pl.when(k != 0)
    def _():
        o_ref[...] += part


def _ffn_kernel_scratch(x_ref, w1_ref, b1_ref, w2_ref, b2_ref, o_ref, acc_ref):
    """Non-f32 output path: f32 VMEM accumulator, cast once at the last k."""
    k = pl.program_id(1)

    @pl.when(k == 0)
    def _():
        acc_ref[...] = jnp.zeros_like(acc_ref)

    x = x_ref[...].astype(jnp.bfloat16)
    h = jnp.dot(x, w1_ref[...], preferred_element_type=jnp.float32)
    h = jnp.maximum(h + b1_ref[...], 0.0)
    acc_ref[...] += jnp.dot(h.astype(jnp.bfloat16), w2_ref[...],
                            preferred_element_type=jnp.float32)

    @pl.when(k == pl.num_programs(1) - 1)
    def _():
        o_ref[...] = (acc_ref[...] + b2_ref[...]).astype(o_ref.dtype)


def prepare_ffn_params(w1, b1, w2, b2):
    """Pad feature dims to multiples of 128 and cast weights to bf16.

    Call ONCE per parameter set and cache the result: this hoists the per-call
    pad/cast HBM traffic out of the forward pass. Weights are stored
    transposed relative to torch.nn.Linear (i.e. fc.weight.T).
    Padded d_ff columns are exact zeros (zero w1 column + zero b1 -> relu = 0
    -> zero contribution to fc2), so no masking is needed in the kernel.
    """
    d_model, d_ff = w1.shape
    d_model_p = _round_up(d_model, 128)
    d_ff_p = _round_up(d_ff, 128)
    w1p = jnp.pad(w1, ((0, d_model_p - d_model),
                       (0, d_ff_p - d_ff))).astype(jnp.bfloat16)
    b1p = jnp.pad(b1, ((0, d_ff_p - d_ff),)).astype(jnp.float32).reshape(1, d_ff_p)
    w2p = jnp.pad(w2, ((0, d_ff_p - d_ff),
                       (0, d_model_p - d_model))).astype(jnp.bfloat16)
    b2p = jnp.pad(b2, ((0, d_model_p - d_model),)).astype(jnp.float32).reshape(1, d_model_p)
    return w1p, b1p, w2p, b2p


@functools.partial(jax.jit, static_argnames=("tile_m", "tile_ff"))
def ffn_forward(x, w1p, b1p, w2p, b2p, *, tile_m=None, tile_ff=512):
    """x: (batch, seq, d_model); w1p/b1p/w2p/b2p from prepare_ffn_params."""
    batch, seq, d_model = x.shape
    d_model_p, d_ff_p = w1p.shape
    if d_model_p != _round_up(d_model, 128):
        raise ValueError("prepared params do not match x's d_model")
    out_dtype = x.dtype
    m = batch * seq

    cfg = _chip_config()
    tile_m_req = cfg["tile_m"] if tile_m is None else tile_m
    tile_m_req = max(16, _round_up(tile_m_req, 16))      # bf16: 16 sublanes/vreg
    if cfg["two_tc"]:
        # At least 2 row tiles when m is small so both TensorCores get work.
        tile_m_eff = min(tile_m_req, max(16, _round_up(-(-m // 2), 16)))
    else:
        tile_m_eff = min(tile_m_req, _round_up(m, 16))
    m_p = _round_up(m, tile_m_eff)

    tile_ff_eff = _ff_tile(d_ff_p, tile_ff)
    grid = (m_p // tile_m_eff, d_ff_p // tile_ff_eff)

    # x stays in its native dtype (cast to bf16 in-kernel after DMA); pad only
    # when needed. Note: padded rows are NOT zero in the output
    # (relu(b1) @ w2 + b2); they are sliced off below.
    x2d = x.reshape(m, d_model)
    if (m_p, d_model_p) != (m, d_model):
        x2d = jnp.pad(x2d, ((0, m_p - m), (0, d_model_p - d_model)))

    acc_in_out = out_dtype == jnp.float32
    kernel = _ffn_kernel_acc_in_out if acc_in_out else _ffn_kernel_scratch
    scratch = () if acc_in_out else (
        pltpu.VMEM((tile_m_eff, d_model_p), jnp.float32),)

    num_row_tiles = m_p // tile_m_eff
    flops = 4 * m_p * d_model_p * d_ff_p
    w_bytes = 2 * (d_model_p * d_ff_p + d_ff_p * d_model_p) + 4 * d_ff_p
    bytes_accessed = (
        m_p * d_model_p * x2d.dtype.itemsize          # x
        + num_row_tiles * w_bytes                     # weights re-streamed/tile
        + d_model_p * 4                               # fc2 bias
        + m_p * d_model_p * jnp.dtype(out_dtype).itemsize)  # output

    out2d = pl.pallas_call(
        kernel,
        out_shape=jax.ShapeDtypeStruct((m_p, d_model_p), out_dtype),
        grid_spec=pltpu.PrefetchScalarGridSpec(
            num_scalar_prefetch=0,
            grid=grid,
            in_specs=[
                pl.BlockSpec((tile_m_eff, d_model_p), lambda i, k: (i, 0)),
                pl.BlockSpec((d_model_p, tile_ff_eff), lambda i, k: (0, k)),
                pl.BlockSpec((1, tile_ff_eff), lambda i, k: (0, k)),
                pl.BlockSpec((tile_ff_eff, d_model_p), lambda i, k: (k, 0)),
                pl.BlockSpec((1, d_model_p), lambda i, k: (0, 0)),
            ],
            out_specs=pl.BlockSpec((tile_m_eff, d_model_p),
                                   lambda i, k: (i, 0)),
            scratch_shapes=scratch,
        ),
        compiler_params=pltpu.CompilerParams(
            dimension_semantics=("parallel", "arbitrary"),
            vmem_limit_bytes=cfg["vmem"],
        ),
        cost_estimate=pl.CostEstimate(
            flops=flops, transcendentals=0, bytes_accessed=bytes_accessed),
    )(x2d, w1p, b1p, w2p, b2p)

    if (m_p, d_model_p) != (m, d_model):
        out2d = out2d[:m, :d_model]
    return out2d.reshape(batch, seq, d_model)


def position_wise_feed_forward(x, w1, b1, w2, b2, *, dropout_rate=0.0,
                               training=False, tile_m=None, tile_ff=512):
    """Convenience wrapper: prep params + forward. For repeated inference,
    call prepare_ffn_params once and reuse with ffn_forward."""
    if training and dropout_rate > 0.0:
        # TODO(synk): training-mode dropout (pltpu.prng_seed +
        # pltpu.prng_random_bits mask) is not implemented.
        raise NotImplementedError("training-mode dropout is not implemented")
    params = prepare_ffn_params(w1, b1, w2, b2)
    return ffn_forward(x, *params, tile_m=tile_m, tile_ff=tile_ff)


def _reference(x, w1, b1, w2, b2):
    """Mimics the kernel's precision: bf16 matmul operands, f32 accumulation."""
    m = x.shape[0] * x.shape[1]
    x2 = x.reshape(m, x.shape[-1]).astype(jnp.bfloat16)
    h = jnp.dot(x2, w1.astype(jnp.bfloat16),
                preferred_element_type=jnp.float32) + b1
    h = jnp.maximum(h, 0.0)
    y = jnp.dot(h.astype(jnp.bfloat16), w2.astype(jnp.bfloat16),
                preferred_element_type=jnp.float32) + b2
    return y.reshape(x.shape).astype(x.dtype)


def _make_params(key, d_model, d_ff):
    kw1, kb1, kw2, kb2 = jax.random.split(key, 4)
    lim1 = 1.0 / (d_model ** 0.5)
    lim2 = 1.0 / (d_ff ** 0.5)
    w1 = jax.random.uniform(kw1, (d_model, d_ff), jnp.float32, -lim1, lim1)
    b1 = jax.random.uniform(kb1, (d_ff,), jnp.float32, -lim1, lim1)
    w2 = jax.random.uniform(kw2, (d_ff, d_model), jnp.float32, -lim2, lim2)
    b2 = jax.random.uniform(kb2, (d_model,), jnp.float32, -lim2, lim2)
    return w1, b1, w2, b2


if __name__ == "__main__":
    key = jax.random.PRNGKey(0)
    k1, k2, k3, k4 = jax.random.split(key, 4)

    # Main check: hoisted param prep + forward, lane-dense shapes.
    batch, seq, d_model, d_ff = 2, 8, 256, 512
    x = jax.random.normal(k1, (batch, seq, d_model), dtype=jnp.float32)
    w1, b1, w2, b2 = _make_params(k2, d_model, d_ff)

    prepped = prepare_ffn_params(w1, b1, w2, b2)      # hoisted: call once, cache
    out = jax.block_until_ready(ffn_forward(x, *prepped))
    ref = _reference(x, w1, b1, w2, b2)
    assert out.shape == (batch, seq, d_model)
    assert jnp.allclose(out, ref, atol=5e-3, rtol=5e-3), "mismatch vs reference"

    # Second check: exercises the zero-padding path (non-multiple-of-128 dims).
    d_model2, d_ff2 = 96, 200
    x2 = jax.random.normal(k3, (batch, seq, d_model2), dtype=jnp.float32)
    w1b, b1b, w2b, b2b = _make_params(k4, d_model2, d_ff2)
    out2 = jax.block_until_ready(
        position_wise_feed_forward(x2, w1b, b1b, w2b, b2b))
    ref2 = _reference(x2, w1b, b1b, w2b, b2b)
    assert out2.shape == (batch, seq, d_model2)
    assert jnp.allclose(out2, ref2, atol=5e-3, rtol=5e-3), "padded mismatch"

    # Third check: bf16 input exercises the scratch-accumulator kernel path.
    x3 = x.astype(jnp.bfloat16)
    out3 = jax.block_until_ready(ffn_forward(x3, *prepped))
    ref3 = _reference(x3, w1, b1, w2, b2)
    assert out3.dtype == jnp.bfloat16 and out3.shape == (batch, seq, d_model)
    assert jnp.allclose(out3.astype(jnp.float32), ref3.astype(jnp.float32),
                        atol=2e-2, rtol=2e-2), "bf16 mismatch"

    print("KERNEL_OK")
</pallas_src>

<mosaic_0001>
module attributes {stable_mosaic.version = 11 : i64} {
  func.func @_ffn_kernel_acc_in_out(%arg0: i32, %arg1: i32, %arg2: memref<16x256xf32, #tpu.memory_space<vmem>>, %arg3: memref<256x512xbf16, #tpu.memory_space<vmem>>, %arg4: memref<1x512xf32, #tpu.memory_space<vmem>>, %arg5: memref<512x256xbf16, #tpu.memory_space<vmem>>, %arg6: memref<1x256xf32, #tpu.memory_space<vmem>>, %arg7: memref<16x256xf32, #tpu.memory_space<vmem>>) attributes {dimension_semantics = [#tpu.dimension_semantics<parallel>, #tpu.dimension_semantics<arbitrary>], iteration_bounds = array<i64: 1, 1>, scalar_prefetch = 0 : i64, scratch_operands = 0 : i64, tpu.core_type = #tpu.core_type<tc>, window_params = [{transform_indices = @transform_0, window_bounds = array<i64: 16, 256>}, {transform_indices = @transform_1, window_bounds = array<i64: 256, 512>}, {transform_indices = @transform_2, window_bounds = array<i64: 1, 512>}, {transform_indices = @transform_3, window_bounds = array<i64: 512, 256>}, {pipeline_mode = #tpu.pipeline_mode<synchronous>, transform_indices = @transform_4, window_bounds = array<i64: 1, 256>}, {transform_indices = @transform_5, window_bounds = array<i64: 16, 256>}]} {
    %c0 = arith.constant 0 : index
    %c0_0 = arith.constant 0 : index
    %0 = vector.load %arg2[%c0, %c0_0] : memref<16x256xf32, #tpu.memory_space<vmem>>, vector<16x256xf32>
    %1 = arith.truncf %0 : vector<16x256xf32> to vector<16x256xbf16>
    %c0_1 = arith.constant 0 : index
    %c0_2 = arith.constant 0 : index
    %2 = vector.load %arg3[%c0_1, %c0_2] : memref<256x512xbf16, #tpu.memory_space<vmem>>, vector<256x512xbf16>
    %cst = arith.constant dense<0.000000e+00> : vector<16x512xf32>
    %3 = tpu.matmul %1, %2, %cst {dimension_numbers = #tpu.dot_dimension_numbers<[1], [0], [0], [1], [0, 0, 1, 1], [], []>} : vector<16x256xbf16>, vector<256x512xbf16>, vector<16x512xf32> -> vector<16x512xf32>
    %c0_3 = arith.constant 0 : index
    %c0_4 = arith.constant 0 : index
    %4 = vector.load %arg4[%c0_3, %c0_4] : memref<1x512xf32, #tpu.memory_space<vmem>>, vector<1x512xf32>
    %5 = vector.broadcast %4 : vector<1x512xf32> to vector<16x512xf32>
    %6 = arith.addf %3, %5 : vector<16x512xf32>
    %cst_5 = arith.constant 0.000000e+00 : f32
    %7 = vector.broadcast %cst_5 : f32 to vector<16x512xf32>
    %8 = arith.maximumf %6, %7 : vector<16x512xf32>
    %9 = arith.truncf %8 : vector<16x512xf32> to vector<16x512xbf16>
    %c0_6 = arith.constant 0 : index
    %c0_7 = arith.constant 0 : index
    %10 = vector.load %arg5[%c0_6, %c0_7] : memref<512x256xbf16, #tpu.memory_space<vmem>>, vector<512x256xbf16>
    %cst_8 = arith.constant dense<0.000000e+00> : vector<16x256xf32>
    %11 = tpu.matmul %9, %10, %cst_8 {dimension_numbers = #tpu.dot_dimension_numbers<[1], [0], [0], [1], [0, 0, 1, 1], [], []>} : vector<16x512xbf16>, vector<512x256xbf16>, vector<16x256xf32> -> vector<16x256xf32>
    %c0_i32 = arith.constant 0 : i32
    %12 = arith.cmpi eq, %arg1, %c0_i32 : i32
    %13 = arith.extui %12 : i1 to i32
    %c0_i32_9 = arith.constant 0 : i32
    %14 = arith.cmpi ne, %13, %c0_i32_9 : i32
    scf.if %14 {
      %c0_12 = arith.constant 0 : index
      %c0_13 = arith.constant 0 : index
      %18 = vector.load %arg6[%c0_12, %c0_13] : memref<1x256xf32, #tpu.memory_space<vmem>>, vector<1x256xf32>
      %19 = vector.broadcast %18 : vector<1x256xf32> to vector<16x256xf32>
      %20 = arith.addf %11, %19 : vector<16x256xf32>
      %c0_14 = arith.constant 0 : index
      %c0_15 = arith.constant 0 : index
      %21 = vector.load %arg7[%c0_14, %c0_15] : memref<16x256xf32, #tpu.memory_space<vmem>>, vector<16x256xf32>
      tpu.vector_store %arg7[%c0_14, %c0_15], %20 {strides = array<i32>} : memref<16x256xf32, #tpu.memory_space<vmem>>, vector<16x256xf32>,
    } else {
    }
    %c0_i32_10 = arith.constant 0 : i32
    %15 = arith.cmpi ne, %arg1, %c0_i32_10 : i32
    %16 = arith.extui %15 : i1 to i32
    %c0_i32_11 = arith.constant 0 : i32
    %17 = arith.cmpi ne, %16, %c0_i32_11 : i32
    scf.if %17 {
      %c0_12 = arith.constant 0 : index
      %c0_13 = arith.constant 0 : index
      %18 = vector.load %arg7[%c0_12, %c0_13] : memref<16x256xf32, #tpu.memory_space<vmem>>, vector<16x256xf32>
      %19 = arith.addf %18, %11 : vector<16x256xf32>
      %c0_14 = arith.constant 0 : index
      %c0_15 = arith.constant 0 : index
      %20 = vector.load %arg7[%c0_14, %c0_15] : memref<16x256xf32, #tpu.memory_space<vmem>>, vector<16x256xf32>
      tpu.vector_store %arg7[%c0_14, %c0_15], %19 {strides = array<i32>} : memref<16x256xf32, #tpu.memory_space<vmem>>, vector<16x256xf32>,
    } else {
    }
    return
  }
  func.func @transform_0(%arg0: i32, %arg1: i32) -> (i32, i32) {
    %c0_i32 = arith.constant 0 : i32
    %c0_i32_0 = arith.constant 0 : i32
    return %arg0, %c0_i32 : i32, i32
  }
  func.func @transform_1(%arg0: i32, %arg1: i32) -> (i32, i32) {
    %c0_i32 = arith.constant 0 : i32
    %c0_i32_0 = arith.constant 0 : i32
    return %c0_i32, %arg1 : i32, i32
  }
  func.func @transform_2(%arg0: i32, %arg1: i32) -> (i32, i32) {
    %c0_i32 = arith.constant 0 : i32
    %c0_i32_0 = arith.constant 0 : i32
    return %c0_i32, %arg1 : i32, i32
  }
  func.func @transform_3(%arg0: i32, %arg1: i32) -> (i32, i32) {
    %c0_i32 = arith.constant 0 : i32
    %c0_i32_0 = arith.constant 0 : i32
    return %arg1, %c0_i32 : i32, i32
  }
  func.func @transform_4(%arg0: i32, %arg1: i32) -> (i32, i32) {
    %c0_i32 = arith.constant 0 : i32
    %c0_i32_0 = arith.constant 0 : i32
    %c0_i32_1 = arith.constant 0 : i32
    return %c0_i32, %c0_i32_0 : i32, i32
  }
  func.func @transform_5(%arg0: i32, %arg1: i32) -> (i32, i32) {
    %c0_i32 = arith.constant 0 : i32
    %c0_i32_0 = arith.constant 0 : i32
    return %arg0, %c0_i32 : i32, i32
  }
}

</mosaic_0001>

<llo_original>
// kernel: ffn_forward.1
$region0: #{ffn_forward.1}
  #allocation0 [shape = 'u32[]', space=smem, size = 0x4, offset = 0x4, fixed_abs, tag = 'smem constant byte address 0x4 - core index']
  #allocation1 [shape = 'u32[144,128]{1,0:T(1,128)}', space=vmem, size = 0x12000, scoped, tag = 'internal scratch']
  %s0 = inlined_call_operand.hbm [shape: f32[16,256], index: 0, kind: input, shape index: {}]
  %s1 = inlined_call_operand.hbm [shape: bf16[256,512], index: 1, kind: input, shape index: {}]
  %s2 = inlined_call_operand.hbm [shape: f32[1,512], index: 2, kind: input, shape index: {}]
  %s3 = inlined_call_operand.hbm [shape: bf16[512,256], index: 3, kind: input, shape index: {}]
  %s4 = inlined_call_operand.hbm [shape: f32[1,256], index: 4, kind: input, shape index: {}]
  %s5 = inlined_call_operand.hbm [shape: f32[16,256], index: 5, kind: output, shape index: {}]
  %s6 = sld [smem:[#allocation0]]
  $region58: #{ffn_forward.1} parent=0
    _
  %s8 = ssub.s32 1, %s6
  %s9 = scalar_select 0, %s8, %s6
  $region1: #{ffn_forward.1} parent=0
    #allocation2 [shape = 'u8[16384]{0}', space=vmem, size = 0x4000, scoped, tag = 'input window, operand 0, single buffered']
    #allocation3 [shape = 's32[1]{0}', space=sflag, size = 0x4, scoped, tag = 'scoped memory for ffn_forward.1']
    #allocation4 [shape = 's32[1]{0}', space=sflag, size = 0x4, scoped, tag = 'scoped memory for ffn_forward.1']
    #allocation5 [shape = 'u8[262144]{0}', space=vmem, size = 0x40000, scoped, tag = 'input window, operand 1, single buffered']
    #allocation6 [shape = 's32[1]{0}', space=sflag, size = 0x4, scoped, tag = 'scoped memory for ffn_forward.1']
    #allocation7 [shape = 'u8[2048]{0}', space=vmem, size = 0x800, scoped, tag = 'input window, operand 2, single buffered']
    #allocation8 [shape = 'u8[262144]{0}', space=vmem, size = 0x40000, scoped, tag = 'input window, operand 3, single buffered']
    #allocation9 [shape = 's32[1]{0}', space=sflag, size = 0x4, scoped, tag = 'scoped memory for ffn_forward.1']
    #allocation10 [shape = 'u8[1024]{0}', space=vmem, size = 0x400, scoped, tag = 'input window, operand 4, single buffered']
    #allocation11 [shape = 'u8[16384]{0}', space=vmem, size = 0x4000, scoped, tag = 'output window, operand 0, single buffered']
    %10 = vsyncpa [#allocation3], 0
    %11 = vsyncpa [#allocation6], 0
    %12 = vsyncpa [#allocation9], 0
    %13 = vsyncpa [#allocation4], 0
    // Predicated region
    $region2: #{ffn_forward.1} parent=1 // pred_check
      _
    $region3: #{ffn_forward.1} parent=1 // pred_check_branch
      %15 = sbr.rel (0) target = $region5
    $region4: #{ffn_forward.1} parent=1 // pred_region
      %s17 = ssub.s32 512, 512
      %18 = vsyncadd [#allocation3], %s17
      %s19 = sshll.u32 [#allocation2], 4
      %s20 = int_to_ptr.vmem [resolvable:$true] %s19
      %25 = dma.hbm_to_vmem [thread:$0]  %s0, 512, %s20, [#allocation3], 256, 256, 16
    $region5: #{ffn_forward.1} parent=1 // pred_fallthru
      _
    // Predicated region
    $region6: #{ffn_forward.1} parent=1 // pred_check
      _
    $region7: #{ffn_forward.1} parent=1 // pred_check_branch
      %27 = sbr.rel (0) target = $region9
    $region8: #{ffn_forward.1} parent=1 // pred_region
      %s29 = ssub.s32 8192, 8192
      %30 = vsyncadd [#allocation6], %s29
      %s31 = sshll.u32 [#allocation5], 4
      %s32 = int_to_ptr.vmem [resolvable:$true] %s31
      %37 = dma.hbm_to_vmem [thread:$0]  %s1, 8192, %s32, [#allocation6], 256, 256, 16
    $region9: #{ffn_forward.1} parent=1 // pred_fallthru
      _
    // Predicated region
    $region10: #{ffn_forward.1} parent=1 // pred_check
      _
    $region11: #{ffn_forward.1} parent=1 // pred_check_branch
      %39 = sbr.rel (0) target = $region13
    $region12: #{ffn_forward.1} parent=1 // pred_region
      %s41 = ssub.s32 64, 64
      %42 = vsyncadd [#allocation6], %s41
      %s44 = sshll.u32 [#allocation7], 4
      %s45 = int_to_ptr.vmem [resolvable:$true] %s44
      %47 = dma.hbm_to_vmem [thread:$0]  %s2, 64, %s45, [#allocation6]
    $region13: #{ffn_forward.1} parent=1 // pred_fallthru
      _
    // Predicated region
    $region14: #{ffn_forward.1} parent=1 // pred_check
      _
    $region15: #{ffn_forward.1} parent=1 // pred_check_branch
      %49 = sbr.rel (0) target = $region17
    $region16: #{ffn_forward.1} parent=1 // pred_region
      %s51 = ssub.s32 8192, 8192
      %52 = vsyncadd [#allocation9], %s51
      %s53 = sshll.u32 [#allocation8], 4
      %s54 = int_to_ptr.vmem [resolvable:$true] %s53
      %59 = dma.hbm_to_vmem [thread:$0]  %s3, 8192, %s54, [#allocation9], 128, 128, 8
    $region17: #{ffn_forward.1} parent=1 // pred_fallthru
      _
    // Predicated region
    $region18: #{ffn_forward.1} parent=1 // pred_check
      _
    $region19: #{ffn_forward.1} parent=1 // pred_check_branch
      %61 = sbr.rel (0) target = $region21
    $region20: #{ffn_forward.1} parent=1 // pred_region
      %s63 = ssub.s32 32, 32
      %64 = vsyncadd [#allocation9], %s63
      %s66 = sshll.u32 [#allocation10], 4
      %s67 = int_to_ptr.vmem [resolvable:$true] %s66
      %69 = dma.hbm_to_vmem [thread:$0]  %s4, 32, %s67, [#allocation9]
    $region21: #{ffn_forward.1} parent=1 // pred_fallthru
      _
    // Predicated region
    $region22: #{ffn_forward.1} parent=1 // pred_check
      _
    $region23: #{ffn_forward.1} parent=1 // pred_check_branch
      %71 = sbr.rel (0) target = $region25
    $region24: #{ffn_forward.1} parent=1 // pred_region
      %72 = dma.done [#allocation3], 512
    $region25: #{ffn_forward.1} parent=1 // pred_fallthru
      _
    // Predicated region
    $region26: #{ffn_forward.1} parent=1 // pred_check
      _
    $region27: #{ffn_forward.1} parent=1 // pred_check_branch
      %74 = sbr.rel (0) target = $region29
    $region28: #{ffn_forward.1} parent=1 // pred_region
      %75 = dma.done [#allocation6], 8192
    $region29: #{ffn_forward.1} parent=1 // pred_fallthru
      _
    // Predicated region
    $region30: #{ffn_forward.1} parent=1 // pred_check
      _
    $region31: #{ffn_forward.1} parent=1 // pred_check_branch
      %77 = sbr.rel (0) target = $region33
    $region32: #{ffn_forward.1} parent=1 // pred_region
      %78 = dma.done [#allocation6], 64
    $region33: #{ffn_forward.1} parent=1 // pred_fallthru
      _
    // Predicated region
    $region34: #{ffn_forward.1} parent=1 // pred_check
      _
    $region35: #{ffn_forward.1} parent=1 // pred_check_branch
      %80 = sbr.rel (0) target = $region37
    $region36: #{ffn_forward.1} parent=1 // pred_region
      %81 = dma.done [#allocation9], 8192
    $region37: #{ffn_forward.1} parent=1 // pred_fallthru
      _
    // Predicated region
    $region38: #{ffn_forward.1} parent=1 // pred_check
      _
    $region39: #{ffn_forward.1} parent=1 // pred_check_branch
      %83 = sbr.rel (0) target = $region41
    $region40: #{ffn_forward.1} parent=1 // pred_region
      %84 = dma.done [#allocation9], 32
    $region41: #{ffn_forward.1} parent=1 // pred_fallthru
      _
    %v85 = vld [vmem:[#allocation2] sm:$0xff]
    %v86 = vld [vmem:[#allocation2 + $0x8] sm:$0xff]
    %v87 = vld [vmem:[#allocation2 + $0x10] sm:$0xff]
    %v88 = vld [vmem:[#allocation2 + $0x18] sm:$0xff]
    %v89 = vpack.c.bf16 %v87, %v85
    %v90 = vpack.c.bf16 %v88, %v86
    %v91 = vld [vmem:[#allocation5] sm:$0xff]
    %v92 = vld [vmem:[#allocation5 + $0x8] sm:$0xff]
    %v93 = vld [vmem:[#allocation5 + $0x10] sm:$0xff]
    %v94 = vld [vmem:[#allocation5 + $0x18] sm:$0xff]
    %v95 = vld [vmem:[#allocation5 + $0x20] sm:$0xff]
    %v96 = vld [vmem:[#allocation5 + $0x28] sm:$0xff]
    %v97 = vld [vmem:[#allocation5 + $0x30] sm:$0xff]
    %v98 = vld [vmem:[#allocation5 + $0x38] sm:$0xff]
    %v99 = vld [vmem:[#allocation5 + $0x40] sm:$0xff]
    %v100 = vld [vmem:[#allocation5 + $0x48] sm:$0xff]
    %v101 = vld [vmem:[#allocation5 + $0x50] sm:$0xff]
    %v102 = vld [vmem:[#allocation5 + $0x58] sm:$0xff]
    %v103 = vld [vmem:[#allocation5 + $0x60] sm:$0xff]
    %v104 = vld [vmem:[#allocation5 + $0x68] sm:$0xff]
    %v105 = vld [vmem:[#allocation5 + $0x70] sm:$0xff]
    %v106 = vld [vmem:[#allocation5 + $0x78] sm:$0xff]
    %v107 = vld [vmem:[#allocation5 + $0x80] sm:$0xff]
    %v108 = vld [vmem:[#allocation5 + $0x88] sm:$0xff]
    %v109 = vld [vmem:[#allocation5 + $0x90] sm:$0xff]
    %v110 = vld [vmem:[#allocation5 + $0x98] sm:$0xff]
    %v111 = vld [vmem:[#allocation5 + $0xa0] sm:$0xff]
    %v112 = vld [vmem:[#allocation5 + $0xa8] sm:$0xff]
    %v113 = vld [vmem:[#allocation5 + $0xb0] sm:$0xff]
    %v114 = vld [vmem:[#allocation5 + $0xb8] sm:$0xff]
    %v115 = vld [vmem:[#allocation5 + $0xc0] sm:$0xff]
    %v116 = vld [vmem:[#allocation5 + $0xc8] sm:$0xff]
    %v117 = vld [vmem:[#allocation5 + $0xd0] sm:$0xff]
    %v118 = vld [vmem:[#allocation5 + $0xd8] sm:$0xff]
    %v119 = vld [vmem:[#allocation5 + $0xe0] sm:$0xff]
    %v120 = vld [vmem:[#allocation5 + $0xe8] sm:$0xff]
    %v121 = vld [vmem:[#allocation5 + $0xf0] sm:$0xff]
    %v122 = vld [vmem:[#allocation5 + $0xf8] sm:$0xff]
    %v123 = vld [vmem:[#allocation5 + $0x100] sm:$0xff]
    %v124 = vld [vmem:[#allocation5 + $0x108] sm:$0xff]
    %v125 = vld [vmem:[#allocation5 + $0x110] sm:$0xff]
    %v126 = vld [vmem:[#allocation5 + $0x118] sm:$0xff]
    %v127 = vld [vmem:[#allocation5 + $0x120] sm:$0xff]
    %v128 = vld [vmem:[#allocation5 + $0x128] sm:$0xff]
    %v129 = vld [vmem:[#allocation5 + $0x130] sm:$0xff]
    %v130 = vld [vmem:[#allocation5 + $0x138] sm:$0xff]
    %v131 = vld [vmem:[#allocation5 + $0x140] sm:$0xff]
    %v132 = vld [vmem:[#allocation5 + $0x148] sm:$0xff]
    %v133 = vld [vmem:[#allocation5 + $0x150] sm:$0xff]
    %v134 = vld [vmem:[#allocation5 + $0x158] sm:$0xff]
    %v135 = vld [vmem:[#allocation5 + $0x160] sm:$0xff]
    %v136 = vld [vmem:[#allocation5 + $0x168] sm:$0xff]
    %v137 = vld [vmem:[#allocation5 + $0x170] sm:$0xff]
    %v138 = vld [vmem:[#allocation5 + $0x178] sm:$0xff]
    %v139 = vld [vmem:[#allocation5 + $0x180] sm:$0xff]
    %v140 = vld [vmem:[#allocation5 + $0x188] sm:$0xff]
    %v141 = vld [vmem:[#allocation5 + $0x190] sm:$0xff]
    %v142 = vld [vmem:[#allocation5 + $0x198] sm:$0xff]
    %v143 = vld [vmem:[#allocation5 + $0x1a0] sm:$0xff]
    %v144 = vld [vmem:[#allocation5 + $0x1a8] sm:$0xff]
    %v145 = vld [vmem:[#allocation5 + $0x1b0] sm:$0xff]
    %v146 = vld [vmem:[#allocation5 + $0x1b8] sm:$0xff]
    %v147 = vld [vmem:[#allocation5 + $0x1c0] sm:$0xff]
    %v148 = vld [vmem:[#allocation5 + $0x1c8] sm:$0xff]
    %v149 = vld [vmem:[#allocation5 + $0x1d0] sm:$0xff]
    %v150 = vld [vmem:[#allocation5 + $0x1d8] sm:$0xff]
    %v151 = vld [vmem:[#allocation5 + $0x1e0] sm:$0xff]
    %v152 = vld [vmem:[#allocation5 + $0x1e8] sm:$0xff]
    %v153 = vld [vmem:[#allocation5 + $0x1f0] sm:$0xff]
    %v154 = vld [vmem:[#allocation5 + $0x1f8] sm:$0xff]
    %v155 = vld [vmem:[#allocation7] sm:$0xf]
    %v157 = vlaneseq
    %v158 = vshrl.u32 %v157, 7
    %v159 = vsub.s32 0, %v158
    %v160 = vrot.slane %v155, %v159
    %v161 = vlaneseq
    %v162 = vshrl.u32 %v161, 7
    %v163 = vsub.s32 1, %v162
    %v164 = vrot.slane %v155, %v163
    %v165 = vlaneseq
    %v166 = vshrl.u32 %v165, 7
    %v167 = vsub.s32 2, %v166
    %v168 = vrot.slane %v155, %v167
    %v169 = vlaneseq
    %v170 = vshrl.u32 %v169, 7
    %v171 = vsub.s32 3, %v170
    %v172 = vrot.slane %v155, %v171
    %v241 = vunpack.c.l.b16 %v91
    %v242 = vunpack.c.h.b16 %v91
    %v243 = vunpack.c.l.b16 %v92
    %v244 = vunpack.c.h.b16 %v92
    %v245 = vunpack.c.l.b16 %v93
    %v246 = vunpack.c.h.b16 %v93
    %v247 = vunpack.c.l.b16 %v94
    %v248 = vunpack.c.h.b16 %v94
    %v249 = vunpack.c.l.b16 %v95
    %v250 = vunpack.c.h.b16 %v95
    %v251 = vunpack.c.l.b16 %v96
    %v252 = vunpack.c.h.b16 %v96
    %v253 = vunpack.c.l.b16 %v97
    %v254 = vunpack.c.h.b16 %v97
    %v255 = vunpack.c.l.b16 %v98
    %v256 = vunpack.c.h.b16 %v98
    %v257 = vunpack.c.l.b16 %v99
    %v258 = vunpack.c.h.b16 %v99
    %v259 = vunpack.c.l.b16 %v100
    %v260 = vunpack.c.h.b16 %v100
    %v261 = vunpack.c.l.b16 %v101
    %v262 = vunpack.c.h.b16 %v101
    %v263 = vunpack.c.l.b16 %v102
    %v264 = vunpack.c.h.b16 %v102
    %v265 = vunpack.c.l.b16 %v103
    %v266 = vunpack.c.h.b16 %v103
    %v267 = vunpack.c.l.b16 %v104
    %v268 = vunpack.c.h.b16 %v104
    %v269 = vunpack.c.l.b16 %v105
    %v270 = vunpack.c.h.b16 %v105
    %v271 = vunpack.c.l.b16 %v106
    %v272 = vunpack.c.h.b16 %v106
    %v273 = vunpack.c.l.b16 %v107
    %v274 = vunpack.c.h.b16 %v107
    %v275 = vunpack.c.l.b16 %v108
    %v276 = vunpack.c.h.b16 %v108
    %v277 = vunpack.c.l.b16 %v109
    %v278 = vunpack.c.h.b16 %v109
    %v279 = vunpack.c.l.b16 %v110
    %v280 = vunpack.c.h.b16 %v110
    %v281 = vunpack.c.l.b16 %v111
    %v282 = vunpack.c.h.b16 %v111
    %v283 = vunpack.c.l.b16 %v112
    %v284 = vunpack.c.h.b16 %v112
    %v285 = vunpack.c.l.b16 %v113
    %v286 = vunpack.c.h.b16 %v113
    %v287 = vunpack.c.l.b16 %v114
    %v288 = vunpack.c.h.b16 %v114
    %v289 = vunpack.c.l.b16 %v115
    %v290 = vunpack.c.h.b16 %v115
    %v291 = vunpack.c.l.b16 %v116
    %v292 = vunpack.c.h.b16 %v116
    %v293 = vunpack.c.l.b16 %v117
    %v294 = vunpack.c.h.b16 %v117
    %v295 = vunpack.c.l.b16 %v118
    %v296 = vunpack.c.h.b16 %v118
    %v297 = vunpack.c.l.b16 %v119
    %v298 = vunpack.c.h.b16 %v119
    %v299 = vunpack.c.l.b16 %v120
    %v300 = vunpack.c.h.b16 %v120
    %v301 = vunpack.c.l.b16 %v121
    %v302 = vunpack.c.h.b16 %v121
    %v303 = vunpack.c.l.b16 %v122
    %v304 = vunpack.c.h.b16 %v122
    %v305 = vunpack.c.l.b16 %v123
    %v306 = vunpack.c.h.b16 %v123
    %v307 = vunpack.c.l.b16 %v124
    %v308 = vunpack.c.h.b16 %v124
    %v309 = vunpack.c.l.b16 %v125
    %v310 = vunpack.c.h.b16 %v125
    %v311 = vunpack.c.l.b16 %v126
    %v312 = vunpack.c.h.b16 %v126
    %v313 = vunpack.c.l.b16 %v127
    %v314 = vunpack.c.h.b16 %v127
    %v315 = vunpack.c.l.b16 %v128
    %v316 = vunpack.c.h.b16 %v128
    %v317 = vunpack.c.l.b16 %v129
    %v318 = vunpack.c.h.b16 %v129
    %v319 = vunpack.c.l.b16 %v130
    %v320 = vunpack.c.h.b16 %v130
    %v321 = vunpack.c.l.b16 %v131
    %v322 = vunpack.c.h.b16 %v131
    %v323 = vunpack.c.l.b16 %v132
    %v324 = vunpack.c.h.b16 %v132
    %v325 = vunpack.c.l.b16 %v133
    %v326 = vunpack.c.h.b16 %v133
    %v327 = vunpack.c.l.b16 %v134
    %v328 = vunpack.c.h.b16 %v134
    %v329 = vunpack.c.l.b16 %v135
    %v330 = vunpack.c.h.b16 %v135
    %v331 = vunpack.c.l.b16 %v136
    %v332 = vunpack.c.h.b16 %v136
    %v333 = vunpack.c.l.b16 %v137
    %v334 = vunpack.c.h.b16 %v137
    %v335 = vunpack.c.l.b16 %v138
    %v336 = vunpack.c.h.b16 %v138
    %v337 = vunpack.c.l.b16 %v139
    %v338 = vunpack.c.h.b16 %v139
    %v339 = vunpack.c.l.b16 %v140
    %v340 = vunpack.c.h.b16 %v140
    %v341 = vunpack.c.l.b16 %v141
    %v342 = vunpack.c.h.b16 %v141
    %v343 = vunpack.c.l.b16 %v142
    %v344 = vunpack.c.h.b16 %v142
    %v345 = vunpack.c.l.b16 %v143
    %v346 = vunpack.c.h.b16 %v143
    %v347 = vunpack.c.l.b16 %v144
    %v348 = vunpack.c.h.b16 %v144
    %v349 = vunpack.c.l.b16 %v145
    %v350 = vunpack.c.h.b16 %v145
    %v351 = vunpack.c.l.b16 %v146
    %v352 = vunpack.c.h.b16 %v146
    %v353 = vunpack.c.l.b16 %v147
    %v354 = vunpack.c.h.b16 %v147
    %v355 = vunpack.c.l.b16 %v148
    %v356 = vunpack.c.h.b16 %v148
    %v357 = vunpack.c.l.b16 %v149
    %v358 = vunpack.c.h.b16 %v149
    %v359 = vunpack.c.l.b16 %v150
    %v360 = vunpack.c.h.b16 %v150
    %v361 = vunpack.c.l.b16 %v151
    %v362 = vunpack.c.h.b16 %v151
    %v363 = vunpack.c.l.b16 %v152
    %v364 = vunpack.c.h.b16 %v152
    %v365 = vunpack.c.l.b16 %v153
    %v366 = vunpack.c.h.b16 %v153
    %v367 = vunpack.c.l.b16 %v154
    %v368 = vunpack.c.h.b16 %v154
    %v369 = vpack.c.b16 %v245, %v241
    %v370 = vpack.c.b16 %v246, %v242
    %v371 = vpack.c.b16 %v247, %v243
    %v372 = vpack.c.b16 %v248, %v244
    %v373 = vpack.c.b16 %v253, %v249
    %v374 = vpack.c.b16 %v254, %v250
    %v375 = vpack.c.b16 %v255, %v251
    %v376 = vpack.c.b16 %v256, %v252
    %v377 = vpack.c.b16 %v261, %v257
    %v378 = vpack.c.b16 %v262, %v258
    %v379 = vpack.c.b16 %v263, %v259
    %v380 = vpack.c.b16 %v264, %v260
    %v381 = vpack.c.b16 %v269, %v265
    %v382 = vpack.c.b16 %v270, %v266
    %v383 = vpack.c.b16 %v271, %v267
    %v384 = vpack.c.b16 %v272, %v268
    %v385 = vpack.c.b16 %v277, %v273
    %v386 = vpack.c.b16 %v278, %v274
    %v387 = vpack.c.b16 %v279, %v275
    %v388 = vpack.c.b16 %v280, %v276
    %v389 = vpack.c.b16 %v285, %v281
    %v390 = vpack.c.b16 %v286, %v282
    %v391 = vpack.c.b16 %v287, %v283
    %v392 = vpack.c.b16 %v288, %v284
    %v393 = vpack.c.b16 %v293, %v289
    %v394 = vpack.c.b16 %v294, %v290
    %v395 = vpack.c.b16 %v295, %v291
    %v396 = vpack.c.b16 %v296, %v292
    %v397 = vpack.c.b16 %v301, %v297
    %v398 = vpack.c.b16 %v302, %v298
    %v399 = vpack.c.b16 %v303, %v299
    %v400 = vpack.c.b16 %v304, %v300
    %v401 = vpack.c.b16 %v309, %v305
    %v402 = vpack.c.b16 %v310, %v306
    %v403 = vpack.c.b16 %v311, %v307
    %v404 = vpack.c.b16 %v312, %v308
    %v405 = vpack.c.b16 %v317, %v313
    %v406 = vpack.c.b16 %v318, %v314
    %v407 = vpack.c.b16 %v319, %v315
    %v408 = vpack.c.b16 %v320, %v316
    %v409 = vpack.c.b16 %v325, %v321
    %v410 = vpack.c.b16 %v326, %v322
    %v411 = vpack.c.b16 %v327, %v323
    %v412 = vpack.c.b16 %v328, %v324
    %v413 = vpack.c.b16 %v333, %v329
    %v414 = vpack.c.b16 %v334, %v330
    %v415 = vpack.c.b16 %v335, %v331
    %v416 = vpack.c.b16 %v336, %v332
    %v417 = vpack.c.b16 %v341, %v337
    %v418 = vpack.c.b16 %v342, %v338
    %v419 = vpack.c.b16 %v343, %v339
    %v420 = vpack.c.b16 %v344, %v340
    %v421 = vpack.c.b16 %v349, %v345
    %v422 = vpack.c.b16 %v350, %v346
    %v423 = vpack.c.b16 %v351, %v347
    %v424 = vpack.c.b16 %v352, %v348
    %v425 = vpack.c.b16 %v357, %v353
    %v426 = vpack.c.b16 %v358, %v354
    %v427 = vpack.c.b16 %v359, %v355
    %v428 = vpack.c.b16 %v360, %v356
    %v429 = vpack.c.b16 %v365, %v361
    %v430 = vpack.c.b16 %v366, %v362
    %v431 = vpack.c.b16 %v367, %v363
    %v432 = vpack.c.b16 %v368, %v364
    %497 = vmatprep.subr.bf16.mxu0 %v370
    %498 = vmatpush1.bf16.msra.mxu0 %v369
    %499 = vmatprep.subr.bf16.mxu0 %v374
    %500 = vmatpush1.bf16.msra.mxu0 %v373
    %501 = vmatprep.subr.bf16.mxu0 %v378
    %502 = vmatpush1.bf16.msra.mxu0 %v377
    %503 = vmatprep.subr.bf16.mxu0 %v382
    %504 = vmatpush1.bf16.msra.mxu0 %v381
    %505 = vmatprep.subr.bf16.mxu0 %v386
    %506 = vmatpush1.bf16.msra.mxu0 %v385
    %507 = vmatprep.subr.bf16.mxu0 %v390
    %508 = vmatpush1.bf16.msra.mxu0 %v389
    %509 = vmatprep.subr.bf16.mxu0 %v394
    %510 = vmatpush1.bf16.msra.mxu0 %v393
    %511 = vmatprep.subr.bf16.mxu0 %v398
    %512 = vmatpush1.bf16.msra.mxu0 %v397
    %513 = vmatprep.subr.bf16.mxu0 %v402
    %514 = vmatpush1.bf16.msra.mxu0 %v401
    %515 = vmatprep.subr.bf16.mxu0 %v406
    %516 = vmatpush1.bf16.msra.mxu0 %v405
    %517 = vmatprep.subr.bf16.mxu0 %v410
    %518 = vmatpush1.bf16.msra.mxu0 %v409
    %519 = vmatprep.subr.bf16.mxu0 %v414
    %520 = vmatpush1.bf16.msra.mxu0 %v413
    %521 = vmatprep.subr.bf16.mxu0 %v418
    %522 = vmatpush1.bf16.msra.mxu0 %v417
    %523 = vmatprep.subr.bf16.mxu0 %v422
    %524 = vmatpush1.bf16.msra.mxu0 %v421
    %525 = vmatprep.subr.bf16.mxu0 %v426
    %526 = vmatpush1.bf16.msra.mxu0 %v425
    %527 = vmatprep.subr.bf16.mxu0 %v430
    %528 = vmatpush1.bf16.msra.mxu0 %v429
    %529 = vmatprep.mubr.bf16.mxu0 %v90
    %530 = vmatmul.mubr.bf16.gmra.mrb[0].mxu0 %v89
    %v531 = vpop.f32.mrb[0].mxu0
    %v532 = vadd.f32 %v160, %v531
    %v533 = vpop.f32.mrb[0].mxu0
    %v534 = vadd.f32 %v164, %v533
    %v535 = vpop.f32.mrb[0].mxu0
    %v536 = vadd.f32 %v160, %v535
    %v537 = vpop.f32.mrb[0].mxu0
    %v538 = vadd.f32 %v164, %v537
    %539 = vdwg.mxu0
    %540 = vmatprep.subr.bf16.mxu0 %v372
    %541 = vmatpush1.bf16.msra.mxu0 %v371
    %542 = vmatprep.subr.bf16.mxu0 %v376
    %543 = vmatpush1.bf16.msra.mxu0 %v375
    %544 = vmatprep.subr.bf16.mxu0 %v380
    %545 = vmatpush1.bf16.msra.mxu0 %v379
    %546 = vmatprep.subr.bf16.mxu0 %v384
    %547 = vmatpush1.bf16.msra.mxu0 %v383
    %548 = vmatprep.subr.bf16.mxu0 %v388
    %549 = vmatpush1.bf16.msra.mxu0 %v387
    %550 = vmatprep.subr.bf16.mxu0 %v392
    %551 = vmatpush1.bf16.msra.mxu0 %v391
    %552 = vmatprep.subr.bf16.mxu0 %v396
    %553 = vmatpush1.bf16.msra.mxu0 %v395
    %554 = vmatprep.subr.bf16.mxu0 %v400
    %555 = vmatpush1.bf16.msra.mxu0 %v399
    %556 = vmatprep.subr.bf16.mxu0 %v404
    %557 = vmatpush1.bf16.msra.mxu0 %v403
    %558 = vmatprep.subr.bf16.mxu0 %v408
    %559 = vmatpush1.bf16.msra.mxu0 %v407
    %560 = vmatprep.subr.bf16.mxu0 %v412
    %561 = vmatpush1.bf16.msra.mxu0 %v411
    %562 = vmatprep.subr.bf16.mxu0 %v416
    %563 = vmatpush1.bf16.msra.mxu0 %v415
    %564 = vmatprep.subr.bf16.mxu0 %v420
    %565 = vmatpush1.bf16.msra.mxu0 %v419
    %566 = vmatprep.subr.bf16.mxu0 %v424
    %567 = vmatpush1.bf16.msra.mxu0 %v423
    %568 = vmatprep.subr.bf16.mxu0 %v428
    %569 = vmatpush1.bf16.msra.mxu0 %v427
    %570 = vmatprep.subr.bf16.mxu0 %v432
    %571 = vmatpush1.bf16.msra.mxu0 %v431
    %572 = vmatprep.mubr.bf16.mxu0 %v90
    %573 = vmatmul.mubr.bf16.gmra.mrb[0].mxu0 %v89
    %v574 = vpop.f32.mrb[0].mxu0
    %v575 = vadd.f32 %v168, %v574
    %v576 = vpop.f32.mrb[0].mxu0
    %v577 = vadd.f32 %v172, %v576
    %v578 = vpop.f32.mrb[0].mxu0
    %v579 = vadd.f32 %v168, %v578
    %v580 = vpop.f32.mrb[0].mxu0
    %v581 = vadd.f32 %v172, %v580
    %582 = vdwg.mxu0
    %v583 = vmax.f32 %v532, 0.0
    %v584 = vmax.f32 %v534, 0.0
    %v585 = vmax.f32 %v575, 0.0
    %v586 = vmax.f32 %v577, 0.0
    %v587 = vmax.f32 %v536, 0.0
    %v588 = vmax.f32 %v538, 0.0
    %v589 = vmax.f32 %v579, 0.0
    %v590 = vmax.f32 %v581, 0.0
    %v591 = vpack.c.bf16 %v587, %v583
    %v592 = vpack.c.bf16 %v588, %v584
    %v593 = vpack.c.bf16 %v589, %v585
    %v594 = vpack.c.bf16 %v590, %v586
    %v595 = vld [vmem:[#allocation8] sm:$0xff]
    %v596 = vld [vmem:[#allocation8 + $0x8] sm:$0xff]
    %v597 = vld [vmem:[#allocation8 + $0x10] sm:$0xff]
    %v598 = vld [vmem:[#allocation8 + $0x18] sm:$0xff]
    %v599 = vld [vmem:[#allocation8 + $0x20] sm:$0xff]
    %v600 = vld [vmem:[#allocation8 + $0x28] sm:$0xff]
    %v601 = vld [vmem:[#allocation8 + $0x30] sm:$0xff]
    %v602 = vld [vmem:[#allocation8 + $0x38] sm:$0xff]
    %v603 = vld [vmem:[#allocation8 + $0x40] sm:$0xff]
    %v604 = vld [vmem:[#allocation8 + $0x48] sm:$0xff]
    %v605 = vld [vmem:[#allocation8 + $0x50] sm:$0xff]
    %v606 = vld [vmem:[#allocation8 + $0x58] sm:$0xff]
    %v607 = vld [vmem:[#allocation8 + $0x60] sm:$0xff]
    %v608 = vld [vmem:[#allocation8 + $0x68] sm:$0xff]
    %v609 = vld [vmem:[#allocation8 + $0x70] sm:$0xff]
    %v610 = vld [vmem:[#allocation8 + $0x78] sm:$0xff]
    %v611 = vld [vmem:[#allocation8 + $0x80] sm:$0xff]
    %v612 = vld [vmem:[#allocation8 + $0x88] sm:$0xff]
    %v613 = vld [vmem:[#allocation8 + $0x90] sm:$0xff]
    %v614 = vld [vmem:[#allocation8 + $0x98] sm:$0xff]
    %v615 = vld [vmem:[#allocation8 + $0xa0] sm:$0xff]
    %v616 = vld [vmem:[#allocation8 + $0xa8] sm:$0xff]
    %v617 = vld [vmem:[#allocation8 + $0xb0] sm:$0xff]
    %v618 = vld [vmem:[#allocation8 + $0xb8] sm:$0xff]
    %v619 = vld [vmem:[#allocation8 + $0xc0] sm:$0xff]
    %v620 = vld [vmem:[#allocation8 + $0xc8] sm:$0xff]
    %v621 = vld [vmem:[#allocation8 + $0xd0] sm:$0xff]
    %v622 = vld [vmem:[#allocation8 + $0xd8] sm:$0xff]
    %v623 = vld [vmem:[#allocation8 + $0xe0] sm:$0xff]
    %v624 = vld [vmem:[#allocation8 + $0xe8] sm:$0xff]
    %v625 = vld [vmem:[#allocation8 + $0xf0] sm:$0xff]
    %v626 = vld [vmem:[#allocation8 + $0xf8] sm:$0xff]
    %v627 = vld [vmem:[#allocation8 + $0x100] sm:$0xff]
    %v628 = vld [vmem:[#allocation8 + $0x108] sm:$0xff]
    %v629 = vld [vmem:[#allocation8 + $0x110] sm:$0xff]
    %v630 = vld [vmem:[#allocation8 + $0x118] sm:$0xff]
    %v631 = vld [vmem:[#allocation8 + $0x120] sm:$0xff]
    %v632 = vld [vmem:[#allocation8 + $0x128] sm:$0xff]
    %v633 = vld [vmem:[#allocation8 + $0x130] sm:$0xff]
    %v634 = vld [vmem:[#allocation8 + $0x138] sm:$0xff]
    %v635 = vld [vmem:[#allocation8 + $0x140] sm:$0xff]
    %v636 = vld [vmem:[#allocation8 + $0x148] sm:$0xff]
    %v637 = vld [vmem:[#allocation8 + $0x150] sm:$0xff]
    %v638 = vld [vmem:[#allocation8 + $0x158] sm:$0xff]
    %v639 = vld [vmem:[#allocation8 + $0x160] sm:$0xff]
    %v640 = vld [vmem:[#allocation8 + $0x168] sm:$0xff]
    %v641 = vld [vmem:[#allocation8 + $0x170] sm:$0xff]
    %v642 = vld [vmem:[#allocation8 + $0x178] sm:$0xff]
    %v643 = vld [vmem:[#allocation8 + $0x180] sm:$0xff]
    %v644 = vld [vmem:[#allocation8 + $0x188] sm:$0xff]
    %v645 = vld [vmem:[#allocation8 + $0x190] sm:$0xff]
    %v646 = vld [vmem:[#allocation8 + $0x198] sm:$0xff]
    %v647 = vld [vmem:[#allocation8 + $0x1a0] sm:$0xff]
    %v648 = vld [vmem:[#allocation8 + $0x1a8] sm:$0xff]
    %v649 = vld [vmem:[#allocation8 + $0x1b0] sm:$0xff]
    %v650 = vld [vmem:[#allocation8 + $0x1b8] sm:$0xff]
    %v651 = vld [vmem:[#allocation8 + $0x1c0] sm:$0xff]
    %v652 = vld [vmem:[#allocation8 + $0x1c8] sm:$0xff]
    %v653 = vld [vmem:[#allocation8 + $0x1d0] sm:$0xff]
    %v654 = vld [vmem:[#allocation8 + $0x1d8] sm:$0xff]
    %v655 = vld [vmem:[#allocation8 + $0x1e0] sm:$0xff]
    %v656 = vld [vmem:[#allocation8 + $0x1e8] sm:$0xff]
    %v657 = vld [vmem:[#allocation8 + $0x1f0] sm:$0xff]
    %v658 = vld [vmem:[#allocation8 + $0x1f8] sm:$0xff]
    %v723 = vunpack.c.l.b16 %v595
    %v724 = vunpack.c.h.b16 %v595
    %v725 = vunpack.c.l.b16 %v596
    %v726 = vunpack.c.h.b16 %v596
    %v727 = vunpack.c.l.b16 %v597
    %v728 = vunpack.c.h.b16 %v597
    %v729 = vunpack.c.l.b16 %v598
    %v730 = vunpack.c.h.b16 %v598
    %v731 = vunpack.c.l.b16 %v599
    %v732 = vunpack.c.h.b16 %v599
    %v733 = vunpack.c.l.b16 %v600
    %v734 = vunpack.c.h.b16 %v600
    %v735 = vunpack.c.l.b16 %v601
    %v736 = vunpack.c.h.b16 %v601
    %v737 = vunpack.c.l.b16 %v602
    %v738 = vunpack.c.h.b16 %v602
    %v739 = vunpack.c.l.b16 %v603
    %v740 = vunpack.c.h.b16 %v603
    %v741 = vunpack.c.l.b16 %v604
    %v742 = vunpack.c.h.b16 %v604
    %v743 = vunpack.c.l.b16 %v605
    %v744 = vunpack.c.h.b16 %v605
    %v745 = vunpack.c.l.b16 %v606
    %v746 = vunpack.c.h.b16 %v606
    %v747 = vunpack.c.l.b16 %v607
    %v748 = vunpack.c.h.b16 %v607
    %v749 = vunpack.c.l.b16 %v608
    %v750 = vunpack.c.h.b16 %v608
    %v751 = vunpack.c.l.b16 %v609
    %v752 = vunpack.c.h.b16 %v609
    %v753 = vunpack.c.l.b16 %v610
    %v754 = vunpack.c.h.b16 %v610
    %v755 = vunpack.c.l.b16 %v611
    %v756 = vunpack.c.h.b16 %v611
    %v757 = vunpack.c.l.b16 %v612
    %v758 = vunpack.c.h.b16 %v612
    %v759 = vunpack.c.l.b16 %v613
    %v760 = vunpack.c.h.b16 %v613
    %v761 = vunpack.c.l.b16 %v614
    %v762 = vunpack.c.h.b16 %v614
    %v763 = vunpack.c.l.b16 %v615
    %v764 = vunpack.c.h.b16 %v615
    %v765 = vunpack.c.l.b16 %v616
    %v766 = vunpack.c.h.b16 %v616
    %v767 = vunpack.c.l.b16 %v617
    %v768 = vunpack.c.h.b16 %v617
    %v769 = vunpack.c.l.b16 %v618
    %v770 = vunpack.c.h.b16 %v618
    %v771 = vunpack.c.l.b16 %v619
    %v772 = vunpack.c.h.b16 %v619
    %v773 = vunpack.c.l.b16 %v620
    %v774 = vunpack.c.h.b16 %v620
    %v775 = vunpack.c.l.b16 %v621
    %v776 = vunpack.c.h.b16 %v621
    %v777 = vunpack.c.l.b16 %v622
    %v778 = vunpack.c.h.b16 %v622
    %v779 = vunpack.c.l.b16 %v623
    %v780 = vunpack.c.h.b16 %v623
    %v781 = vunpack.c.l.b16 %v624
    %v782 = vunpack.c.h.b16 %v624
    %v783 = vunpack.c.l.b16 %v625
    %v784 = vunpack.c.h.b16 %v625
    %v785 = vunpack.c.l.b16 %v626
    %v786 = vunpack.c.h.b16 %v626
    %v787 = vunpack.c.l.b16 %v627
    %v788 = vunpack.c.h.b16 %v627
    %v789 = vunpack.c.l.b16 %v628
    %v790 = vunpack.c.h.b16 %v628
    %v791 = vunpack.c.l.b16 %v629
    %v792 = vunpack.c.h.b16 %v629
    %v793 = vunpack.c.l.b16 %v630
    %v794 = vunpack.c.h.b16 %v630
    %v795 = vunpack.c.l.b16 %v631
    %v796 = vunpack.c.h.b16 %v631
    %v797 = vunpack.c.l.b16 %v632
    %v798 = vunpack.c.h.b16 %v632
    %v799 = vunpack.c.l.b16 %v633
    %v800 = vunpack.c.h.b16 %v633
    %v801 = vunpack.c.l.b16 %v634
    %v802 = vunpack.c.h.b16 %v634
    %v803 = vunpack.c.l.b16 %v635
    %v804 = vunpack.c.h.b16 %v635
    %v805 = vunpack.c.l.b16 %v636
    %v806 = vunpack.c.h.b16 %v636
    %v807 = vunpack.c.l.b16 %v637
    %v808 = vunpack.c.h.b16 %v637
    %v809 = vunpack.c.l.b16 %v638
    %v810 = vunpack.c.h.b16 %v638
    %v811 = vunpack.c.l.b16 %v639
    %v812 = vunpack.c.h.b16 %v639
    %v813 = vunpack.c.l.b16 %v640
    %v814 = vunpack.c.h.b16 %v640
    %v815 = vunpack.c.l.b16 %v641
    %v816 = vunpack.c.h.b16 %v641
    %v817 = vunpack.c.l.b16 %v642
    %v818 = vunpack.c.h.b16 %v642
    %v819 = vunpack.c.l.b16 %v643
    %v820 = vunpack.c.h.b16 %v643
    %v821 = vunpack.c.l.b16 %v644
    %v822 = vunpack.c.h.b16 %v644
    %v823 = vunpack.c.l.b16 %v645
    %v824 = vunpack.c.h.b16 %v645
    %v825 = vunpack.c.l.b16 %v646
    %v826 = vunpack.c.h.b16 %v646
    %v827 = vunpack.c.l.b16 %v647
    %v828 = vunpack.c.h.b16 %v647
    %v829 = vunpack.c.l.b16 %v648
    %v830 = vunpack.c.h.b16 %v648
    %v831 = vunpack.c.l.b16 %v649
    %v832 = vunpack.c.h.b16 %v649
    %v833 = vunpack.c.l.b16 %v650
    %v834 = vunpack.c.h.b16 %v650
    %v835 = vunpack.c.l.b16 %v651
    %v836 = vunpack.c.h.b16 %v651
    %v837 = vunpack.c.l.b16 %v652
    %v838 = vunpack.c.h.b16 %v652
    %v839 = vunpack.c.l.b16 %v653
    %v840 = vunpack.c.h.b16 %v653
    %v841 = vunpack.c.l.b16 %v654
    %v842 = vunpack.c.h.b16 %v654
    %v843 = vunpack.c.l.b16 %v655
    %v844 = vunpack.c.h.b16 %v655
    %v845 = vunpack.c.l.b16 %v656
    %v846 = vunpack.c.h.b16 %v656
    %v847 = vunpack.c.l.b16 %v657
    %v848 = vunpack.c.h.b16 %v657
    %v849 = vunpack.c.l.b16 %v658
    %v850 = vunpack.c.h.b16 %v658
    %v851 = vpack.c.b16 %v725, %v723
    %v852 = vpack.c.b16 %v726, %v724
    %v853 = vpack.c.b16 %v729, %v727
    %v854 = vpack.c.b16 %v730, %v728
    %v855 = vpack.c.b16 %v733, %v731
    %v856 = vpack.c.b16 %v734, %v732
    %v857 = vpack.c.b16 %v737, %v735
    %v858 = vpack.c.b16 %v738, %v736
    %v859 = vpack.c.b16 %v741, %v739
    %v860 = vpack.c.b16 %v742, %v740
    %v861 = vpack.c.b16 %v745, %v743
    %v862 = vpack.c.b16 %v746, %v744
    %v863 = vpack.c.b16 %v749, %v747
    %v864 = vpack.c.b16 %v750, %v748
    %v865 = vpack.c.b16 %v753, %v751
    %v866 = vpack.c.b16 %v754, %v752
    %v867 = vpack.c.b16 %v757, %v755
    %v868 = vpack.c.b16 %v758, %v756
    %v869 = vpack.c.b16 %v761, %v759
    %v870 = vpack.c.b16 %v762, %v760
    %v871 = vpack.c.b16 %v765, %v763
    %v872 = vpack.c.b16 %v766, %v764
    %v873 = vpack.c.b16 %v769, %v767
    %v874 = vpack.c.b16 %v770, %v768
    %v875 = vpack.c.b16 %v773, %v771
    %v876 = vpack.c.b16 %v774, %v772
    %v877 = vpack.c.b16 %v777, %v775
    %v878 = vpack.c.b16 %v778, %v776
    %v879 = vpack.c.b16 %v781, %v779
    %v880 = vpack.c.b16 %v782, %v780
    %v881 = vpack.c.b16 %v785, %v783
    %v882 = vpack.c.b16 %v786, %v784
    %v883 = vpack.c.b16 %v789, %v787
    %v884 = vpack.c.b16 %v790, %v788
    %v885 = vpack.c.b16 %v793, %v791
    %v886 = vpack.c.b16 %v794, %v792
    %v887 = vpack.c.b16 %v797, %v795
    %v888 = vpack.c.b16 %v798, %v796
    %v889 = vpack.c.b16 %v801, %v799
    %v890 = vpack.c.b16 %v802, %v800
    %v891 = vpack.c.b16 %v805, %v803
    %v892 = vpack.c.b16 %v806, %v804
    %v893 = vpack.c.b16 %v809, %v807
    %v894 = vpack.c.b16 %v810, %v808
    %v895 = vpack.c.b16 %v813, %v811
    %v896 = vpack.c.b16 %v814, %v812
    %v897 = vpack.c.b16 %v817, %v815
    %v898 = vpack.c.b16 %v818, %v816
    %v899 = vpack.c.b16 %v821, %v819
    %v900 = vpack.c.b16 %v822, %v820
    %v901 = vpack.c.b16 %v825, %v823
    %v902 = vpack.c.b16 %v826, %v824
    %v903 = vpack.c.b16 %v829, %v827
    %v904 = vpack.c.b16 %v830, %v828
    %v905 = vpack.c.b16 %v833, %v831
    %v906 = vpack.c.b16 %v834, %v832
    %v907 = vpack.c.b16 %v837, %v835
    %v908 = vpack.c.b16 %v838, %v836
    %v909 = vpack.c.b16 %v841, %v839
    %v910 = vpack.c.b16 %v842, %v840
    %v911 = vpack.c.b16 %v845, %v843
    %v912 = vpack.c.b16 %v846, %v844
    %v913 = vpack.c.b16 %v849, %v847
    %v914 = vpack.c.b16 %v850, %v848
    %979 = vmatprep.subr.bf16.mxu0 %v852
    %980 = vmatpush1.bf16.msra.mxu0 %v851
    %981 = vmatprep.subr.bf16.mxu0 %v854
    %982 = vmatpush1.bf16.msra.mxu0 %v853
    %983 = vmatprep.subr.bf16.mxu0 %v856
    %984 = vmatpush1.bf16.msra.mxu0 %v855
    %985 = vmatprep.subr.bf16.mxu0 %v858
    %986 = vmatpush1.bf16.msra.mxu0 %v857
    %987 = vmatprep.subr.bf16.mxu0 %v860
    %988 = vmatpush1.bf16.msra.mxu0 %v859
    %989 = vmatprep.subr.bf16.mxu0 %v862
    %990 = vmatpush1.bf16.msra.mxu0 %v861
    %991 = vmatprep.subr.bf16.mxu0 %v864
    %992 = vmatpush1.bf16.msra.mxu0 %v863
    %993 = vmatprep.subr.bf16.mxu0 %v866
    %994 = vmatpush1.bf16.msra.mxu0 %v865
    %995 = vmatprep.subr.bf16.mxu0 %v868
    %996 = vmatpush1.bf16.msra.mxu0 %v867
    %997 = vmatprep.subr.bf16.mxu0 %v870
    %998 = vmatpush1.bf16.msra.mxu0 %v869
    %999 = vmatprep.subr.bf16.mxu0 %v872
    %1000 = vmatpush1.bf16.msra.mxu0 %v871
    %1001 = vmatprep.subr.bf16.mxu0 %v874
    %1002 = vmatpush1.bf16.msra.mxu0 %v873
    %1003 = vmatprep.subr.bf16.mxu0 %v876
    %1004 = vmatpush1.bf16.msra.mxu0 %v875
    %1005 = vmatprep.subr.bf16.mxu0 %v878
    %1006 = vmatpush1.bf16.msra.mxu0 %v877
    %1007 = vmatprep.subr.bf16.mxu0 %v880
    %1008 = vmatpush1.bf16.msra.mxu0 %v879
    %1009 = vmatprep.subr.bf16.mxu0 %v882
    %1010 = vmatpush1.bf16.msra.mxu0 %v881
    %1011 = vmatprep.mubr.bf16.mxu0 %v592
    %1012 = vmatmul.mubr.bf16.gmra.mrb[0].mxu0 %v591
    %v1013 = vpop.f32.mrb[0].mxu0
    %v1014 = vadd.f32 0.0, %v1013
    %v1015 = vpop.f32.mrb[0].mxu0
    %v1016 = vadd.f32 0.0, %v1015
    %v1017 = vpop.f32.mrb[0].mxu0
    %v1018 = vadd.f32 0.0, %v1017
    %v1019 = vpop.f32.mrb[0].mxu0
    %v1020 = vadd.f32 0.0, %v1019
    %1021 = vdwg.mxu0
    %1022 = vmatprep.subr.bf16.mxu0 %v884
    %1023 = vmatpush1.bf16.msra.mxu0 %v883
    %1024 = vmatprep.subr.bf16.mxu0 %v886
    %1025 = vmatpush1.bf16.msra.mxu0 %v885
    %1026 = vmatprep.subr.bf16.mxu0 %v888
    %1027 = vmatpush1.bf16.msra.mxu0 %v887
    %1028 = vmatprep.subr.bf16.mxu0 %v890
    %1029 = vmatpush1.bf16.msra.mxu0 %v889
    %1030 = vmatprep.subr.bf16.mxu0 %v892
    %1031 = vmatpush1.bf16.msra.mxu0 %v891
    %1032 = vmatprep.subr.bf16.mxu0 %v894
    %1033 = vmatpush1.bf16.msra.mxu0 %v893
    %1034 = vmatprep.subr.bf16.mxu0 %v896
    %1035 = vmatpush1.bf16.msra.mxu0 %v895
    %1036 = vmatprep.subr.bf16.mxu0 %v898
    %1037 = vmatpush1.bf16.msra.mxu0 %v897
    %1038 = vmatprep.subr.bf16.mxu0 %v900
    %1039 = vmatpush1.bf16.msra.mxu0 %v899
    %1040 = vmatprep.subr.bf16.mxu0 %v902
    %1041 = vmatpush1.bf16.msra.mxu0 %v901
    %1042 = vmatprep.subr.bf16.mxu0 %v904
    %1043 = vmatpush1.bf16.msra.mxu0 %v903
    %1044 = vmatprep.subr.bf16.mxu0 %v906
    %1045 = vmatpush1.bf16.msra.mxu0 %v905
    %1046 = vmatprep.subr.bf16.mxu0 %v908
    %1047 = vmatpush1.bf16.msra.mxu0 %v907
    %1048 = vmatprep.subr.bf16.mxu0 %v910
    %1049 = vmatpush1.bf16.msra.mxu0 %v909
    %1050 = vmatprep.subr.bf16.mxu0 %v912
    %1051 = vmatpush1.bf16.msra.mxu0 %v911
    %1052 = vmatprep.subr.bf16.mxu0 %v914
    %1053 = vmatpush1.bf16.msra.mxu0 %v913
    %1054 = vmatprep.mubr.bf16.mxu0 %v594
    %1055 = vmatmul.mubr.bf16.gmra.mrb[0].mxu0 %v593
    %v1056 = vpop.f32.mrb[0].mxu0
    %v1057 = vadd.f32 %v1014, %v1056
    %v1058 = vpop.f32.mrb[0].mxu0
    %v1059 = vadd.f32 %v1016, %v1058
    %v1060 = vpop.f32.mrb[0].mxu0
    %v1061 = vadd.f32 %v1018, %v1060
    %v1062 = vpop.f32.mrb[0].mxu0
    %v1063 = vadd.f32 %v1020, %v1062
    %1064 = vdwg.mxu0
    %p1065 = scmp.eq.s32.totalorder 0, 0
    // Predicated region
    $region42: #{ffn_forward.1} parent=1 // pred_check
      %p1066 = pneg %p1065
    $region43: #{ffn_forward.1} parent=1 // pred_check_branch
      %1068 = sbr.rel (%p1066) target = $region45
    $region44: #{ffn_forward.1} parent=1 // pred_region
      %v1069 = vld [vmem:[#allocation10] sm:$0x3]
      %v1071 = vlaneseq
      %v1072 = vshrl.u32 %v1071, 7
      %v1073 = vsub.s32 0, %v1072
      %v1074 = vrot.slane %v1069, %v1073
      %v1075 = vlaneseq
      %v1076 = vshrl.u32 %v1075, 7
      %v1077 = vsub.s32 1, %v1076
      %v1078 = vrot.slane %v1069, %v1077
      %v1081 = vadd.f32 %v1057, %v1074
      %v1082 = vadd.f32 %v1059, %v1078
      %v1083 = vadd.f32 %v1061, %v1074
      %v1084 = vadd.f32 %v1063, %v1078
      %1085 = vst [vmem:[#allocation11] sm:$0xff] %v1081
      %1086 = vst [vmem:[#allocation11 + $0x8] sm:$0xff] %v1082
      %1087 = vst [vmem:[#allocation11 + $0x10] sm:$0xff] %v1083
      %1088 = vst [vmem:[#allocation11 + $0x18] sm:$0xff] %v1084
    $region45: #{ffn_forward.1} parent=1 // pred_fallthru
      _
    %p1089 = scmp.ne.s32.totalorder 0, 0
    // Predicated region
    $region46: #{ffn_forward.1} parent=1 // pred_check
      %p1090 = pneg %p1089
    $region47: #{ffn_forward.1} parent=1 // pred_check_branch
      %1092 = sbr.rel (%p1090) target = $region49
    $region48: #{ffn_forward.1} parent=1 // pred_region
      %v1093 = vld [vmem:[#allocation11] sm:$0xff]
      %v1094 = vld [vmem:[#allocation11 + $0x8] sm:$0xff]
      %v1095 = vld [vmem:[#allocation11 + $0x10] sm:$0xff]
      %v1096 = vld [vmem:[#allocation11 + $0x18] sm:$0xff]
      %v1097 = vadd.f32 %v1093, %v1057
      %v1098 = vadd.f32 %v1094, %v1059
      %v1099 = vadd.f32 %v1095, %v1061
      %v1100 = vadd.f32 %v1096, %v1063
      %1101 = vst [vmem:[#allocation11] sm:$0xff] %v1097
      %1102 = vst [vmem:[#allocation11 + $0x8] sm:$0xff] %v1098
      %1103 = vst [vmem:[#allocation11 + $0x10] sm:$0xff] %v1099
      %1104 = vst [vmem:[#allocation11 + $0x18] sm:$0xff] %v1100
    $region49: #{ffn_forward.1} parent=1 // pred_fallthru
      _
    // Predicated region
    $region50: #{ffn_forward.1} parent=1 // pred_check
      _
    $region51: #{ffn_forward.1} parent=1 // pred_check_branch
      %1106 = sbr.rel (0) target = $region53
    $region52: #{ffn_forward.1} parent=1 // pred_region
      %s1108 = ssub.s32 512, 512
      %1109 = vsyncadd [#allocation4], %s1108
      %s1110 = sshll.u32 [#allocation11], 4
      %s1111 = int_to_ptr.vmem [resolvable:$true] %s1110
      %1116 = dma.vmem_to_hbm [thread:$0]  %s1111, 512, %s5, [#allocation4], 256, 256, 16
    $region53: #{ffn_forward.1} parent=1 // pred_fallthru
      _
    // Predicated region
    $region54: #{ffn_forward.1} parent=1 // pred_check
      _
    $region55: #{ffn_forward.1} parent=1 // pred_check_branch
      %1118 = sbr.rel (0) target = $region57
    $region56: #{ffn_forward.1} parent=1 // pred_region
      %1119 = dma.done [#allocation4], 512
    $region57: #{ffn_forward.1} parent=1 // pred_fallthru
      _
    %1120 = vsyncpa [#allocation3], 1
    %1121 = vsyncpa [#allocation6], 1
    %1122 = vsyncpa [#allocation9], 1
    %1123 = vsyncpa [#allocation4], 1

</llo_original>
